<compile_context>
chip_gen: v6e
topology: v6e:2x2x1
jax: 0.10.0
libtpu: 0.0.40
codegen_flags: <defaults>
</compile_context>

<pallas_src>
import jax
import jax.numpy as jnp
from jax.experimental import pallas as pl
from jax.experimental.pallas import tpu as pltpu


def _lane_sum(x):
    # Reduce all leading axes, keep the lane axis: (..., L) -> (1, L).
    while x.ndim > 2:
        x = jnp.sum(x, axis=0)
    return jnp.sum(x, axis=0, keepdims=True)


def _loss_kernel(org_img_ref, org_masks_ref, real_layer_ref, pre_layer_ref,
                 recon_img_ref, pre_masks_ref, out_ref, acc_ref):
    t = pl.program_id(2)

    @pl.when(t == 0)
    def _():
        acc_ref[...] = jnp.zeros_like(acc_ref)

    # Per-tile views: (C, TR, 128), spatial dim dense on sublanes+lanes.
    org = org_img_ref[0].astype(jnp.float32)
    masks = org_masks_ref[0].astype(jnp.float32)
    real_l = real_layer_ref[0].astype(jnp.float32)
    pre_l = pre_layer_ref[0].astype(jnp.float32)
    recon = recon_img_ref[0].astype(jnp.float32)
    pm = pre_masks_ref[0].astype(jnp.float32)

    c_msk = masks.shape[0]
    lanes = masks.shape[-1]

    # org_mask_all / overlap.  The PyTorch overlap mask is exactly {0,1}:
    # only pixels where sum(masks) == 2 survive the `!= 1 -> 0` write.
    mask_sum = jnp.sum(masks, axis=0, keepdims=True)            # (1, TR, L)
    mask_all = (mask_sum != 0.0).astype(jnp.float32)
    overlap = (mask_sum == 2.0).astype(jnp.float32)

    # GS / LG squared-error partial sums.
    diff_img = (recon - org) * mask_all
    gs_part = _lane_sum(diff_img * diff_img)
    diff_l = pre_l - real_l
    lg_part = _lane_sum(diff_l * diff_l)

    # BCE(pre_masks, cat(masks, masks)) with the PyTorch -100 log clamp:
    #   sum = -( sum(label * (logp - log1mp)) + sum(log1mp) )
    # and label[c] == masks[c % c_msk], so channel pairs fold onto masks.
    logp = jnp.maximum(jnp.log(pm), -100.0)                     # (c_pm, TR, L)
    log1mp = jnp.maximum(jnp.log(1.0 - pm), -100.0)
    d = logp - log1mp
    d_fold = d[:c_msk] + d[c_msk:]                              # (c_msk, TR, L)
    bce1_part = -(_lane_sum(masks * d_fold) + _lane_sum(log1mp))

    # BCE(pre_masks * overlap, overlap): with overlap in {0,1} the per-element
    # loss is overlap * (-clamp(log(pm)))  — reuses logp, no second log pass.
    logp_csum = jnp.sum(logp, axis=0, keepdims=True)            # (1, TR, L)
    bce2_part = -_lane_sum(overlap * logp_csum)

    # Soft-dice components.  One sigmoid pass only:
    #   sigmoid(pm * overlap) == sigmoid(pm) where overlap==1 else 0.5.
    s1 = jax.nn.sigmoid(pm)                                     # (c_pm, TR, L)
    s1_fold = s1[:c_msk] + s1[c_msk:]                           # (c_msk, TR, L)
    s1_csum = jnp.sum(s1_fold, axis=0, keepdims=True)           # (1, TR, L)
    inter1_part = _lane_sum(masks * s1_fold)
    s1_sum_part = _lane_sum(s1_csum)
    masks_sum_part = _lane_sum(mask_sum)
    inter2_part = _lane_sum(overlap * s1_csum)
    n_ovl_part = _lane_sum(overlap)

    # Single full-vreg accumulator update (rows 9..15 stay zero).
    upd = jnp.concatenate(
        [gs_part, lg_part, bce1_part, bce2_part, inter1_part, s1_sum_part,
         masks_sum_part, inter2_part, n_ovl_part,
         jnp.zeros((7, lanes), jnp.float32)], axis=0)           # (16, L)
    acc_ref[...] += upd

    @pl.when(t == pl.num_programs(2) - 1)
    def _():
        out_ref[0, 0] = acc_ref[...]


def _round_up(x, m):
    return -(-x // m) * m


def _choose_tiling(hw, target_rows):
    # Dense (rows, 128) layout with rows a multiple of 8 (spatial dim is
    # zero-padded host-side).  Pick the largest tile (multiple of 8,
    # <= target) whose extra padding stays <= ~12.5% of the rows.
    rows_min = _round_up(_round_up(hw, 128) // 128, 8)
    if rows_min <= target_rows:
        return rows_min, rows_min                 # single tile
    max_waste = max(8, rows_min // 8)
    for tr in range(target_rows, 7, -8):
        rows = _round_up(rows_min, tr)
        if rows - rows_min <= max_waste:
            return tr, rows
    return 8, rows_min


def layer_seg_loss(org_image, org_masks, real_layer, pre_layer,
                   recon_image, pre_masks):
    B, c_img, H, W = org_image.shape
    hw = H * W
    c_msk = org_masks.shape[1]
    c_lay = real_layer.shape[1]
    c_pm = pre_masks.shape[1]
    assert c_pm == 2 * c_msk, "pre_masks must have 2x the mask channels"

    inputs = (org_image, org_masks, real_layer, pre_layer, recon_image,
              pre_masks)
    itemsize = max(jnp.dtype(x.dtype).itemsize for x in inputs)
    # HBM-bandwidth bound: big spatial tiles amortise per-grid-step overhead.
    # (Callers should feed bf16 to halve bytes; accumulation stays f32.)
    target_rows = 1024 if itemsize <= 2 else 512
    tr, rows = _choose_tiling(hw, target_rows)
    n_pad = rows * 128 - hw
    n_tiles = rows // tr

    # Split the spatial-tile axis in two whenever possible so both v7x
    # TensorCores get work even when B == 1 (harmless on single-TC chips;
    # total step count is unchanged, partial sums are summed in the wrapper).
    splits = 2 if (n_tiles >= 2 and n_tiles % 2 == 0) else 1
    tiles_per_split = n_tiles // splits

    def fold(x):
        # (B, C, H, W) -> (B, C, rows, 128): dense sublane/lane tiles, spatial
        # dim zero-padded (artifact corrected analytically at finalize).
        # Dtype is passed through (bf16 inputs stay bf16 over the DMA).
        x = x.reshape(x.shape[0], x.shape[1], hw)
        if n_pad:
            x = jnp.pad(x, ((0, 0), (0, 0), (0, n_pad)))
        return x.reshape(x.shape[0], x.shape[1], rows, 128)

    folded = tuple(fold(x) for x in inputs)

    def in_spec(c):
        return pl.BlockSpec(
            (1, c, tr, 128),
            lambda b, s, t: (b, 0, s * tiles_per_split + t, 0))

    out_spec = pl.BlockSpec((1, 1, 16, 128), lambda b, s, t: (b, s, 0, 0))
    out_shape = jax.ShapeDtypeStruct((B, splits, 16, 128), jnp.float32)

    total_c = 2 * c_img + c_msk + 2 * c_lay + c_pm
    # Raise scoped VMEM so the big tile keeps full double-buffering (v5e
    # default is only 16 MiB), but cap at 48 MiB for the v7x 64 MiB TC.
    in_bytes_step = sum(x.shape[1] * jnp.dtype(x.dtype).itemsize
                        for x in inputs) * tr * 128
    f32_bytes_step = total_c * tr * 128 * 4
    vmem_limit = int(min(48 << 20,
                         max(32 << 20,
                             2 * in_bytes_step + 6 * f32_bytes_step
                             + (4 << 20))))

    bytes_accessed = sum(int(x.size) * jnp.dtype(x.dtype).itemsize
                         for x in folded) + B * splits * 16 * 128 * 4
    cost = pl.CostEstimate(
        flops=int(30 * B * total_c * rows * 128),
        transcendentals=int(3 * B * c_pm * rows * 128),
        bytes_accessed=int(bytes_accessed))

    out = pl.pallas_call(
        _loss_kernel,
        grid=(B, splits, tiles_per_split),
        in_specs=[in_spec(c_img), in_spec(c_msk), in_spec(c_lay),
                  in_spec(c_lay), in_spec(c_img), in_spec(c_pm)],
        out_specs=out_spec,
        out_shape=out_shape,
        scratch_shapes=[pltpu.VMEM((16, 128), jnp.float32)],
        compiler_params=pltpu.CompilerParams(
            dimension_semantics=("parallel", "parallel", "arbitrary"),
            vmem_limit_bytes=vmem_limit),
        cost_estimate=cost,
    )(*folded)

    # Combine core-split partials + lane sums, then do the (tiny) nonlinear
    # finalize in plain JAX so the split reduction stays exact.
    totals = jnp.sum(out, axis=(1, 3))                          # (B, 16)
    gs_sum = totals[:, 0]
    lg_sum = totals[:, 1]
    bce1_sum = totals[:, 2]
    bce2_sum = totals[:, 3]
    inter1 = totals[:, 4]
    s1_sum = totals[:, 5] - 0.5 * c_pm * n_pad  # sigmoid(0)=0.5 pad artifact
    masks_sum = totals[:, 6]
    inter2 = totals[:, 7]
    n_ovl = totals[:, 8]

    gs_mean = gs_sum / (c_img * hw)
    lg_mean = lg_sum / (c_lay * hw)
    bce1_mean = bce1_sum / (c_pm * hw)
    bce2_mean = bce2_sum / (c_pm * hw)
    dice1 = 2.0 * (inter1 + 1.0) / (s1_sum + 2.0 * masks_sum + 1.0)
    s2_sum = inter2 + 0.5 * (c_pm * hw - c_pm * n_ovl)
    dice2 = 2.0 * (inter2 + 1.0) / (s2_sum + c_pm * n_ovl + 1.0)

    GS_loss = jnp.sqrt(jnp.mean(gs_mean))
    LG_loss = jnp.sqrt(jnp.mean(lg_mean))
    D_loss_BCE = jnp.mean(bce1_mean) + jnp.mean(bce2_mean)
    D_loss_Dice = (1.0 - jnp.mean(dice1)) + (1.0 - jnp.mean(dice2))
    D_loss = 0.5 * D_loss_BCE + 0.5 * D_loss_Dice
    # TODO(synk): the PyTorch module host-prints GS/D/LG via .item(); omitted.
    return 0.3 * D_loss + 0.3 * GS_loss + 0.4 * LG_loss


def layer_seg_loss_ref(org_image, org_masks, real_layer, pre_layer,
                       recon_image, pre_masks):
    # Pure-JAX reference mirroring the PyTorch forward.
    org_mask_all = jnp.sum(org_masks, axis=1, keepdims=True)
    org_mask_all = jnp.where(org_mask_all != 0, 1.0, 0.0)
    org_image = org_image * org_mask_all
    recon_image = recon_image * org_mask_all
    GS = jnp.sqrt(jnp.mean((recon_image - org_image) ** 2))
    LG = jnp.sqrt(jnp.mean((pre_layer - real_layer) ** 2))
    overlap = jnp.sum(org_masks, axis=1, keepdims=True) / 2.0
    overlap = jnp.where(overlap == 1.0, overlap, 0.0)
    overlap4 = jnp.concatenate([overlap] * 4, axis=1)
    label = jnp.concatenate([org_masks, org_masks], axis=1)

    def bce(p, t):
        lp = jnp.maximum(jnp.log(p), -100.0)
        l1p = jnp.maximum(jnp.log(1.0 - p), -100.0)
        return jnp.mean(-(t * lp + (1.0 - t) * l1p))

    def dice(logits, t):
        bs = t.shape[0]
        m1 = jax.nn.sigmoid(logits).reshape(bs, -1)
        m2 = t.reshape(bs, -1)
        inter = (m1 * m2).sum(1)
        score = 2.0 * (inter + 1.0) / (m1.sum(1) + m2.sum(1) + 1.0)
        return 1.0 - score.sum() / bs

    D_BCE = bce(pre_masks, label) + bce(pre_masks * overlap4, overlap4)
    D_Dice = dice(pre_masks, label) + dice(pre_masks * overlap4, overlap4)
    D = 0.5 * D_BCE + 0.5 * D_Dice
    return 0.3 * D + 0.3 * GS + 0.4 * LG


if __name__ == "__main__":
    key = jax.random.PRNGKey(0)
    ks = jax.random.split(key, 6)
    B, H, W = 2, 16, 16
    org_image = jax.random.uniform(ks[0], (B, 1, H, W), jnp.float32)
    org_masks = (jax.random.uniform(ks[1], (B, 2, H, W)) > 0.5).astype(jnp.float32)
    real_layer = jax.random.uniform(ks[2], (B, 2, H, W), jnp.float32)
    pre_layer = jax.random.uniform(ks[3], (B, 2, H, W), jnp.float32)
    recon_image = jax.random.uniform(ks[4], (B, 1, H, W), jnp.float32)
    pre_masks = jax.nn.sigmoid(jax.random.normal(ks[5], (B, 4, H, W), jnp.float32))

    loss = layer_seg_loss(org_image, org_masks, real_layer, pre_layer,
                          recon_image, pre_masks)
    loss = jax.block_until_ready(loss)

    ref = layer_seg_loss_ref(org_image, org_masks, real_layer, pre_layer,
                             recon_image, pre_masks)
    assert jnp.allclose(loss, ref, rtol=1e-3, atol=1e-3), (loss, ref)

    # bf16-ingestion path (recommended bandwidth mode); f32 accumulation keeps
    # it numerically sane — just smoke-test that it compiles and is finite.
    bf16_inputs = tuple(x.astype(jnp.bfloat16) for x in
                        (org_image, org_masks, real_layer, pre_layer,
                         recon_image, pre_masks))
    loss_bf16 = jax.block_until_ready(layer_seg_loss(*bf16_inputs))
    assert bool(jnp.isfinite(loss_bf16))

    print("KERNEL_OK")
</pallas_src>

<mosaic_0001>
module attributes {stable_mosaic.version = 11 : i64} {
  func.func @_loss_kernel(%arg0: i32, %arg1: i32, %arg2: i32, %arg3: memref<1x1x8x128xf32, #tpu.memory_space<vmem>>, %arg4: memref<1x2x8x128xf32, #tpu.memory_space<vmem>>, %arg5: memref<1x2x8x128xf32, #tpu.memory_space<vmem>>, %arg6: memref<1x2x8x128xf32, #tpu.memory_space<vmem>>, %arg7: memref<1x1x8x128xf32, #tpu.memory_space<vmem>>, %arg8: memref<1x4x8x128xf32, #tpu.memory_space<vmem>>, %arg9: memref<1x1x16x128xf32, #tpu.memory_space<vmem>>, %arg10: memref<16x128xf32, #tpu.memory_space<vmem>>) attributes {dimension_semantics = [#tpu.dimension_semantics<parallel>, #tpu.dimension_semantics<parallel>, #tpu.dimension_semantics<arbitrary>], iteration_bounds = array<i64: 2, 1, 1>, scalar_prefetch = 0 : i64, scratch_operands = 1 : i64, tpu.core_type = #tpu.core_type<tc>, window_params = [{transform_indices = @transform_0, window_bounds = array<i64: 1, 1, 8, 128>}, {transform_indices = @transform_1, window_bounds = array<i64: 1, 2, 8, 128>}, {transform_indices = @transform_2, window_bounds = array<i64: 1, 2, 8, 128>}, {transform_indices = @transform_3, window_bounds = array<i64: 1, 2, 8, 128>}, {transform_indices = @transform_4, window_bounds = array<i64: 1, 1, 8, 128>}, {transform_indices = @transform_5, window_bounds = array<i64: 1, 4, 8, 128>}, {transform_indices = @transform_6, window_bounds = array<i64: 1, 1, 16, 128>}]} {
    %c0_i32 = arith.constant 0 : i32
    %0 = arith.cmpi eq, %arg2, %c0_i32 : i32
    %1 = arith.extui %0 : i1 to i32
    %c0_i32_0 = arith.constant 0 : i32
    %2 = arith.cmpi ne, %1, %c0_i32_0 : i32
    scf.if %2 {
      %cst_61 = arith.constant 0.000000e+00 : f32
      %101 = vector.broadcast %cst_61 : f32 to vector<16x128xf32>
      %c0_62 = arith.constant 0 : index
      %c0_63 = arith.constant 0 : index
      %102 = vector.load %arg10[%c0_62, %c0_63] : memref<16x128xf32, #tpu.memory_space<vmem>>, vector<16x128xf32>
      tpu.vector_store %arg10[%c0_62, %c0_63], %101 {strides = array<i32>} : memref<16x128xf32, #tpu.memory_space<vmem>>, vector<16x128xf32>,
    } else {
    }
    %c0 = arith.constant 0 : index
    %c0_1 = arith.constant 0 : index
    %c0_2 = arith.constant 0 : index
    %c0_3 = arith.constant 0 : index
    %3 = vector.load %arg3[%c0, %c0_1, %c0_2, %c0_3] : memref<1x1x8x128xf32, #tpu.memory_space<vmem>>, vector<1x1x8x128xf32>
    %4 = vector.shape_cast %3 : vector<1x1x8x128xf32> to vector<1x8x128xf32>
    %c0_4 = arith.constant 0 : index
    %c0_5 = arith.constant 0 : index
    %c0_6 = arith.constant 0 : index
    %c0_7 = arith.constant 0 : index
    %5 = vector.load %arg4[%c0_4, %c0_5, %c0_6, %c0_7] : memref<1x2x8x128xf32, #tpu.memory_space<vmem>>, vector<1x2x8x128xf32>
    %6 = vector.shape_cast %5 : vector<1x2x8x128xf32> to vector<2x8x128xf32>
    %c0_8 = arith.constant 0 : index
    %c0_9 = arith.constant 0 : index
    %c0_10 = arith.constant 0 : index
    %c0_11 = arith.constant 0 : index
    %7 = vector.load %arg5[%c0_8, %c0_9, %c0_10, %c0_11] : memref<1x2x8x128xf32, #tpu.memory_space<vmem>>, vector<1x2x8x128xf32>
    %8 = vector.shape_cast %7 : vector<1x2x8x128xf32> to vector<2x8x128xf32>
    %c0_12 = arith.constant 0 : index
    %c0_13 = arith.constant 0 : index
    %c0_14 = arith.constant 0 : index
    %c0_15 = arith.constant 0 : index
    %9 = vector.load %arg6[%c0_12, %c0_13, %c0_14, %c0_15] : memref<1x2x8x128xf32, #tpu.memory_space<vmem>>, vector<1x2x8x128xf32>
    %10 = vector.shape_cast %9 : vector<1x2x8x128xf32> to vector<2x8x128xf32>
    %c0_16 = arith.constant 0 : index
    %c0_17 = arith.constant 0 : index
    %c0_18 = arith.constant 0 : index
    %c0_19 = arith.constant 0 : index
    %11 = vector.load %arg7[%c0_16, %c0_17, %c0_18, %c0_19] : memref<1x1x8x128xf32, #tpu.memory_space<vmem>>, vector<1x1x8x128xf32>
    %12 = vector.shape_cast %11 : vector<1x1x8x128xf32> to vector<1x8x128xf32>
    %c0_20 = arith.constant 0 : index
    %c0_21 = arith.constant 0 : index
    %c0_22 = arith.constant 0 : index
    %c0_23 = arith.constant 0 : index
    %13 = vector.load %arg8[%c0_20, %c0_21, %c0_22, %c0_23] : memref<1x4x8x128xf32, #tpu.memory_space<vmem>>, vector<1x4x8x128xf32>
    %14 = vector.shape_cast %13 : vector<1x4x8x128xf32> to vector<4x8x128xf32>
    %cst = arith.constant dense<0.000000e+00> : vector<8x128xf32>
    %15 = vector.multi_reduction <add>, %6, %cst [0] : vector<2x8x128xf32> to vector<8x128xf32>
    %16 = vector.shape_cast %15 : vector<8x128xf32> to vector<1x8x128xf32>
    %cst_24 = arith.constant 0.000000e+00 : f32
    %17 = vector.broadcast %cst_24 : f32 to vector<1x8x128xf32>
    %18 = arith.cmpf one, %16, %17 : vector<1x8x128xf32>
    %19 = arith.extui %18 : vector<1x8x128xi1> to vector<1x8x128xi32>
    %20 = arith.sitofp %19 : vector<1x8x128xi32> to vector<1x8x128xf32>
    %cst_25 = arith.constant 2.000000e+00 : f32
    %21 = vector.broadcast %cst_25 : f32 to vector<1x8x128xf32>
    %22 = arith.cmpf oeq, %16, %21 : vector<1x8x128xf32>
    %23 = arith.extui %22 : vector<1x8x128xi1> to vector<1x8x128xi32>
    %24 = arith.sitofp %23 : vector<1x8x128xi32> to vector<1x8x128xf32>
    %25 = arith.subf %12, %4 : vector<1x8x128xf32>
    %26 = arith.mulf %25, %20 : vector<1x8x128xf32>
    %27 = arith.mulf %26, %26 : vector<1x8x128xf32>
    %cst_26 = arith.constant dense<0.000000e+00> : vector<8x128xf32>
    %28 = vector.multi_reduction <add>, %27, %cst_26 [0] : vector<1x8x128xf32> to vector<8x128xf32>
    %cst_27 = arith.constant dense<0.000000e+00> : vector<128xf32>
    %29 = vector.multi_reduction <add>, %28, %cst_27 [0] : vector<8x128xf32> to vector<128xf32>
    %30 = vector.shape_cast %29 : vector<128xf32> to vector<1x128xf32>
    %31 = arith.subf %10, %8 : vector<2x8x128xf32>
    %32 = arith.mulf %31, %31 : vector<2x8x128xf32>
    %cst_28 = arith.constant dense<0.000000e+00> : vector<8x128xf32>
    %33 = vector.multi_reduction <add>, %32, %cst_28 [0] : vector<2x8x128xf32> to vector<8x128xf32>
    %cst_29 = arith.constant dense<0.000000e+00> : vector<128xf32>
    %34 = vector.multi_reduction <add>, %33, %cst_29 [0] : vector<8x128xf32> to vector<128xf32>
    %35 = vector.shape_cast %34 : vector<128xf32> to vector<1x128xf32>
    %36 = math.log %14 : vector<4x8x128xf32>
    %cst_30 = arith.constant -1.000000e+02 : f32
    %37 = vector.broadcast %cst_30 : f32 to vector<4x8x128xf32>
    %38 = arith.maximumf %36, %37 : vector<4x8x128xf32>
    %cst_31 = arith.constant 1.000000e+00 : f32
    %39 = vector.broadcast %cst_31 : f32 to vector<4x8x128xf32>
    %40 = arith.subf %39, %14 : vector<4x8x128xf32>
    %41 = math.log %40 : vector<4x8x128xf32>
    %cst_32 = arith.constant -1.000000e+02 : f32
    %42 = vector.broadcast %cst_32 : f32 to vector<4x8x128xf32>
    %43 = arith.maximumf %41, %42 : vector<4x8x128xf32>
    %44 = arith.subf %38, %43 : vector<4x8x128xf32>
    %45 = vector.extract_strided_slice %44 {offsets = [0, 0, 0], sizes = [2, 8, 128], strides = [1, 1, 1]} : vector<4x8x128xf32> to vector<2x8x128xf32>
    %46 = vector.extract_strided_slice %44 {offsets = [2, 0, 0], sizes = [2, 8, 128], strides = [1, 1, 1]} : vector<4x8x128xf32> to vector<2x8x128xf32>
    %47 = arith.addf %45, %46 : vector<2x8x128xf32>
    %48 = arith.mulf %6, %47 : vector<2x8x128xf32>
    %cst_33 = arith.constant dense<0.000000e+00> : vector<8x128xf32>
    %49 = vector.multi_reduction <add>, %48, %cst_33 [0] : vector<2x8x128xf32> to vector<8x128xf32>
    %cst_34 = arith.constant dense<0.000000e+00> : vector<128xf32>
    %50 = vector.multi_reduction <add>, %49, %cst_34 [0] : vector<8x128xf32> to vector<128xf32>
    %51 = vector.shape_cast %50 : vector<128xf32> to vector<1x128xf32>
    %cst_35 = arith.constant dense<0.000000e+00> : vector<8x128xf32>
    %52 = vector.multi_reduction <add>, %43, %cst_35 [0] : vector<4x8x128xf32> to vector<8x128xf32>
    %cst_36 = arith.constant dense<0.000000e+00> : vector<128xf32>
    %53 = vector.multi_reduction <add>, %52, %cst_36 [0] : vector<8x128xf32> to vector<128xf32>
    %54 = vector.shape_cast %53 : vector<128xf32> to vector<1x128xf32>
    %55 = arith.addf %51, %54 : vector<1x128xf32>
    %cst_37 = arith.constant 0.000000e+00 : f32
    %56 = vector.broadcast %cst_37 : f32 to vector<1x128xf32>
    %57 = arith.subf %56, %55 : vector<1x128xf32>
    %cst_38 = arith.constant dense<0.000000e+00> : vector<8x128xf32>
    %58 = vector.multi_reduction <add>, %38, %cst_38 [0] : vector<4x8x128xf32> to vector<8x128xf32>
    %59 = vector.shape_cast %58 : vector<8x128xf32> to vector<1x8x128xf32>
    %60 = arith.mulf %24, %59 : vector<1x8x128xf32>
    %cst_39 = arith.constant dense<0.000000e+00> : vector<8x128xf32>
    %61 = vector.multi_reduction <add>, %60, %cst_39 [0] : vector<1x8x128xf32> to vector<8x128xf32>
    %cst_40 = arith.constant dense<0.000000e+00> : vector<128xf32>
    %62 = vector.multi_reduction <add>, %61, %cst_40 [0] : vector<8x128xf32> to vector<128xf32>
    %63 = vector.shape_cast %62 : vector<128xf32> to vector<1x128xf32>
    %cst_41 = arith.constant 0.000000e+00 : f32
    %64 = vector.broadcast %cst_41 : f32 to vector<1x128xf32>
    %65 = arith.subf %64, %63 : vector<1x128xf32>
    %66 = arith.negf %14 : vector<4x8x128xf32>
    %67 = math.exp %66 : vector<4x8x128xf32>
    %cst_42 = arith.constant 1.000000e+00 : f32
    %68 = vector.broadcast %cst_42 : f32 to vector<4x8x128xf32>
    %69 = arith.addf %68, %67 : vector<4x8x128xf32>
    %70 = arith.divf %68, %69 : vector<4x8x128xf32>
    %71 = vector.extract_strided_slice %70 {offsets = [0, 0, 0], sizes = [2, 8, 128], strides = [1, 1, 1]} : vector<4x8x128xf32> to vector<2x8x128xf32>
    %72 = vector.extract_strided_slice %70 {offsets = [2, 0, 0], sizes = [2, 8, 128], strides = [1, 1, 1]} : vector<4x8x128xf32> to vector<2x8x128xf32>
    %73 = arith.addf %71, %72 : vector<2x8x128xf32>
    %cst_43 = arith.constant dense<0.000000e+00> : vector<8x128xf32>
    %74 = vector.multi_reduction <add>, %73, %cst_43 [0] : vector<2x8x128xf32> to vector<8x128xf32>
    %75 = vector.shape_cast %74 : vector<8x128xf32> to vector<1x8x128xf32>
    %76 = arith.mulf %6, %73 : vector<2x8x128xf32>
    %cst_44 = arith.constant dense<0.000000e+00> : vector<8x128xf32>
    %77 = vector.multi_reduction <add>, %76, %cst_44 [0] : vector<2x8x128xf32> to vector<8x128xf32>
    %cst_45 = arith.constant dense<0.000000e+00> : vector<128xf32>
    %78 = vector.multi_reduction <add>, %77, %cst_45 [0] : vector<8x128xf32> to vector<128xf32>
    %79 = vector.shape_cast %78 : vector<128xf32> to vector<1x128xf32>
    %cst_46 = arith.constant dense<0.000000e+00> : vector<8x128xf32>
    %80 = vector.multi_reduction <add>, %75, %cst_46 [0] : vector<1x8x128xf32> to vector<8x128xf32>
    %cst_47 = arith.constant dense<0.000000e+00> : vector<128xf32>
    %81 = vector.multi_reduction <add>, %80, %cst_47 [0] : vector<8x128xf32> to vector<128xf32>
    %82 = vector.shape_cast %81 : vector<128xf32> to vector<1x128xf32>
    %cst_48 = arith.constant dense<0.000000e+00> : vector<8x128xf32>
    %83 = vector.multi_reduction <add>, %16, %cst_48 [0] : vector<1x8x128xf32> to vector<8x128xf32>
    %cst_49 = arith.constant dense<0.000000e+00> : vector<128xf32>
    %84 = vector.multi_reduction <add>, %83, %cst_49 [0] : vector<8x128xf32> to vector<128xf32>
    %85 = vector.shape_cast %84 : vector<128xf32> to vector<1x128xf32>
    %86 = arith.mulf %24, %75 : vector<1x8x128xf32>
    %cst_50 = arith.constant dense<0.000000e+00> : vector<8x128xf32>
    %87 = vector.multi_reduction <add>, %86, %cst_50 [0] : vector<1x8x128xf32> to vector<8x128xf32>
    %cst_51 = arith.constant dense<0.000000e+00> : vector<128xf32>
    %88 = vector.multi_reduction <add>, %87, %cst_51 [0] : vector<8x128xf32> to vector<128xf32>
    %89 = vector.shape_cast %88 : vector<128xf32> to vector<1x128xf32>
    %cst_52 = arith.constant dense<0.000000e+00> : vector<8x128xf32>
    %90 = vector.multi_reduction <add>, %24, %cst_52 [0] : vector<1x8x128xf32> to vector<8x128xf32>
    %cst_53 = arith.constant dense<0.000000e+00> : vector<128xf32>
    %91 = vector.multi_reduction <add>, %90, %cst_53 [0] : vector<8x128xf32> to vector<128xf32>
    %92 = vector.shape_cast %91 : vector<128xf32> to vector<1x128xf32>
    %cst_54 = arith.constant 0.000000e+00 : f32
    %93 = vector.broadcast %cst_54 : f32 to vector<7x128xf32>
    %94 = tpu.concatenate %30, %35, %57, %65, %79, %82, %85, %89, %92, %93 in 0 : vector<1x128xf32>, vector<1x128xf32>, vector<1x128xf32>, vector<1x128xf32>, vector<1x128xf32>, vector<1x128xf32>, vector<1x128xf32>, vector<1x128xf32>, vector<1x128xf32>, vector<7x128xf32> -> vector<16x128xf32>
    %c0_55 = arith.constant 0 : index
    %c0_56 = arith.constant 0 : index
    %95 = vector.load %arg10[%c0_55, %c0_56] : memref<16x128xf32, #tpu.memory_space<vmem>>, vector<16x128xf32>
    %96 = arith.addf %95, %94 : vector<16x128xf32>
    %c0_57 = arith.constant 0 : index
    %c0_58 = arith.constant 0 : index
    %97 = vector.load %arg10[%c0_57, %c0_58] : memref<16x128xf32, #tpu.memory_space<vmem>>, vector<16x128xf32>
    tpu.vector_store %arg10[%c0_57, %c0_58], %96 {strides = array<i32>} : memref<16x128xf32, #tpu.memory_space<vmem>>, vector<16x128xf32>,
    %c0_i32_59 = arith.constant 0 : i32
    %98 = arith.cmpi eq, %arg2, %c0_i32_59 : i32
    %99 = arith.extui %98 : i1 to i32
    %c0_i32_60 = arith.constant 0 : i32
    %100 = arith.cmpi ne, %99, %c0_i32_60 : i32
    scf.if %100 {
      %c0_61 = arith.constant 0 : index
      %c0_62 = arith.constant 0 : index
      %101 = vector.load %arg10[%c0_61, %c0_62] : memref<16x128xf32, #tpu.memory_space<vmem>>, vector<16x128xf32>
      %c0_63 = arith.constant 0 : index
      %c0_64 = arith.constant 0 : index
      %c0_65 = arith.constant 0 : index
      %c0_66 = arith.constant 0 : index
      %102 = vector.load %arg9[%c0_63, %c0_64, %c0_65, %c0_66] : memref<1x1x16x128xf32, #tpu.memory_space<vmem>>, vector<1x1x16x128xf32>
      %103 = vector.shape_cast %102 : vector<1x1x16x128xf32> to vector<16x128xf32>
      %104 = vector.shape_cast %101 : vector<16x128xf32> to vector<1x1x16x128xf32>
      tpu.vector_store %arg9[%c0_63, %c0_64, %c0_65, %c0_66], %104 {strides = array<i32>} : memref<1x1x16x128xf32, #tpu.memory_space<vmem>>, vector<1x1x16x128xf32>,
    } else {
    }
    return
  }
  func.func @transform_0(%arg0: i32, %arg1: i32, %arg2: i32) -> (i32, i32, i32, i32) {
    %c1_i32 = arith.constant 1 : i32
    %0 = arith.muli %arg1, %c1_i32 : i32
    %1 = arith.addi %0, %arg2 : i32
    %c0_i32 = arith.constant 0 : i32
    %c0_i32_0 = arith.constant 0 : i32
    %c0_i32_1 = arith.constant 0 : i32
    return %arg0, %c0_i32, %1, %c0_i32_0 : i32, i32, i32, i32
  }
  func.func @transform_1(%arg0: i32, %arg1: i32, %arg2: i32) -> (i32, i32, i32, i32) {
    %c1_i32 = arith.constant 1 : i32
    %0 = arith.muli %arg1, %c1_i32 : i32
    %1 = arith.addi %0, %arg2 : i32
    %c0_i32 = arith.constant 0 : i32
    %c0_i32_0 = arith.constant 0 : i32
    %c0_i32_1 = arith.constant 0 : i32
    return %arg0, %c0_i32, %1, %c0_i32_0 : i32, i32, i32, i32
  }
  func.func @transform_2(%arg0: i32, %arg1: i32, %arg2: i32) -> (i32, i32, i32, i32) {
    %c1_i32 = arith.constant 1 : i32
    %0 = arith.muli %arg1, %c1_i32 : i32
    %1 = arith.addi %0, %arg2 : i32
    %c0_i32 = arith.constant 0 : i32
    %c0_i32_0 = arith.constant 0 : i32
    %c0_i32_1 = arith.constant 0 : i32
    return %arg0, %c0_i32, %1, %c0_i32_0 : i32, i32, i32, i32
  }
  func.func @transform_3(%arg0: i32, %arg1: i32, %arg2: i32) -> (i32, i32, i32, i32) {
    %c1_i32 = arith.constant 1 : i32
    %0 = arith.muli %arg1, %c1_i32 : i32
    %1 = arith.addi %0, %arg2 : i32
    %c0_i32 = arith.constant 0 : i32
    %c0_i32_0 = arith.constant 0 : i32
    %c0_i32_1 = arith.constant 0 : i32
    return %arg0, %c0_i32, %1, %c0_i32_0 : i32, i32, i32, i32
  }
  func.func @transform_4(%arg0: i32, %arg1: i32, %arg2: i32) -> (i32, i32, i32, i32) {
    %c1_i32 = arith.constant 1 : i32
    %0 = arith.muli %arg1, %c1_i32 : i32
    %1 = arith.addi %0, %arg2 : i32
    %c0_i32 = arith.constant 0 : i32
    %c0_i32_0 = arith.constant 0 : i32
    %c0_i32_1 = arith.constant 0 : i32
    return %arg0, %c0_i32, %1, %c0_i32_0 : i32, i32, i32, i32
  }
  func.func @transform_5(%arg0: i32, %arg1: i32, %arg2: i32) -> (i32, i32, i32, i32) {
    %c1_i32 = arith.constant 1 : i32
    %0 = arith.muli %arg1, %c1_i32 : i32
    %1 = arith.addi %0, %arg2 : i32
    %c0_i32 = arith.constant 0 : i32
    %c0_i32_0 = arith.constant 0 : i32
    %c0_i32_1 = arith.constant 0 : i32
    return %arg0, %c0_i32, %1, %c0_i32_0 : i32, i32, i32, i32
  }
  func.func @transform_6(%arg0: i32, %arg1: i32, %arg2: i32) -> (i32, i32, i32, i32) {
    %c0_i32 = arith.constant 0 : i32
    %c0_i32_0 = arith.constant 0 : i32
    %c0_i32_1 = arith.constant 0 : i32
    return %arg0, %arg1, %c0_i32, %c0_i32_0 : i32, i32, i32, i32
  }
}

</mosaic_0001>

<llo_original>
// kernel: tpu_custom_call.1
$region0: #{tpu_custom_call.1}
  #allocation0 [shape = 'u32[]', space=smem, size = 0x4, offset = 0x4, fixed_abs, tag = 'smem constant byte address 0x4 - core index']
  #allocation1 [shape = 'u32[144,128]{1,0:T(1,128)}', space=vmem, size = 0x12000, scoped, tag = 'internal scratch']
  #allocation2 [shape = 'f32[16,128]{1,0:T(8,128)}', space=vmem, size = 0x2000, scoped, tag = 'scratch operand']
  %s0 = inlined_call_operand.hbm [shape: f32[2,1,8,128], index: 0, kind: input, shape index: {}]
  %s1 = inlined_call_operand.hbm [shape: f32[2,2,8,128], index: 1, kind: input, shape index: {}]
  %s2 = inlined_call_operand.hbm [shape: f32[2,2,8,128], index: 2, kind: input, shape index: {}]
  %s3 = inlined_call_operand.hbm [shape: f32[2,2,8,128], index: 3, kind: input, shape index: {}]
  %s4 = inlined_call_operand.hbm [shape: f32[2,1,8,128], index: 4, kind: input, shape index: {}]
  %s5 = inlined_call_operand.hbm [shape: f32[2,4,8,128], index: 5, kind: input, shape index: {}]
  %s6 = inlined_call_operand.hbm [shape: f32[2,1,16,128], index: 6, kind: output, shape index: {}]
  %s7 = sld [smem:[#allocation0]]
  $region89: #{tpu_custom_call.1} parent=0
    _
  %s9 = ssub.s32 1, %s7
  %s10 = scalar_select 0, %s9, %s7
  $region1: #{tpu_custom_call.1} parent=0
    #allocation3 [shape = 'u8[8192]{0}', space=vmem, size = 0x2000, scoped, tag = 'input window, operand 0']
    #allocation4 [shape = 's32[2]{0}', space=sflag, size = 0x8, scoped, tag = 'scoped memory for tpu_custom_call.1']
    #allocation5 [shape = 's32[2]{0}', space=sflag, size = 0x8, scoped, tag = 'scoped memory for tpu_custom_call.1']
    #allocation6 [shape = 'u8[16384]{0}', space=vmem, size = 0x4000, scoped, tag = 'input window, operand 1']
    #allocation7 [shape = 's32[2]{0}', space=sflag, size = 0x8, scoped, tag = 'scoped memory for tpu_custom_call.1']
    #allocation8 [shape = 'u8[16384]{0}', space=vmem, size = 0x4000, scoped, tag = 'input window, operand 2']
    #allocation9 [shape = 'u8[16384]{0}', space=vmem, size = 0x4000, scoped, tag = 'input window, operand 3']
    #allocation10 [shape = 's32[2]{0}', space=sflag, size = 0x8, scoped, tag = 'scoped memory for tpu_custom_call.1']
    #allocation11 [shape = 'u8[8192]{0}', space=vmem, size = 0x2000, scoped, tag = 'input window, operand 4']
    #allocation12 [shape = 'u8[32768]{0}', space=vmem, size = 0x8000, scoped, tag = 'input window, operand 5']
    #allocation13 [shape = 's32[2]{0}', space=sflag, size = 0x8, scoped, tag = 'scoped memory for tpu_custom_call.1']
    #allocation14 [shape = 'u8[16384]{0}', space=vmem, size = 0x4000, scoped, tag = 'output window, operand 0']
    %11 = vsyncpa [#allocation4], 0
    %s12 = scalar_lea.sflag [#allocation4], 1
    %13 = vsyncpa %s12, 0
    %14 = vsyncpa [#allocation7], 0
    %s15 = scalar_lea.sflag [#allocation7], 1
    %16 = vsyncpa %s15, 0
    %17 = vsyncpa [#allocation10], 0
    %s18 = scalar_lea.sflag [#allocation10], 1
    %19 = vsyncpa %s18, 0
    %20 = vsyncpa [#allocation13], 0
    %s21 = scalar_lea.sflag [#allocation13], 1
    %22 = vsyncpa %s21, 0
    %23 = vsyncpa [#allocation5], 0
    %s24 = scalar_lea.sflag [#allocation5], 1
    %25 = vsyncpa %s24, 0
    loop: start=0, step=1, limit=4
    $region2: #{tpu_custom_call.1} parent=1 // loop_pre_header
      _
    $region3: #{tpu_custom_call.1} parent=1 // loop_header
      %s27 = sphi 0, %s31
      %p28 = scmp.ge.s32.totalorder %s27, 4
      %s34 = sphi 0, %s53
      %s35 = sphi 0, %s49
      %s36 = sphi 0, %s45
      %s37 = sphi 0, %s34
      %s38 = sphi 0, %s35
      %s39 = sphi 0, %s36
      %s40 = sphi 0, %s37
      %s41 = sphi 0, %s38
      %s42 = sphi 0, %s39
      %s60 = sphi 0, %s62
      %s63 = sphi 0, %s60
      %s64 = sphi 0, %s63
      %s80 = sphi 0, %s64
      %s90 = sphi 0, %s92
      %s93 = sphi 0, %s90
      %s94 = sphi 0, %s93
      %s110 = sphi 0, %s94
      %s120 = sphi 0, %s122
      %s123 = sphi 0, %s120
      %s124 = sphi 0, %s123
      %s140 = sphi 0, %s124
      %s150 = sphi 0, %s152
      %s153 = sphi 0, %s150
      %s154 = sphi 0, %s153
      %s170 = sphi 0, %s154
      %s180 = sphi 0, %s182
      %s183 = sphi 0, %s180
      %s184 = sphi 0, %s183
      %s200 = sphi 0, %s184
      %s210 = sphi 0, %s212
      %s213 = sphi 0, %s210
      %s214 = sphi 0, %s213
      %s230 = sphi 0, %s214
      %s238 = sphi 0, %s240
      %s241 = sphi 0, %s238
      %s242 = sphi 0, %s241
      %s258 = sphi 0, %s242
    $region4: #{tpu_custom_call.1} parent=1 // loop_header_branch
      %30 = sbr.rel (%p28) target = $region8
    $region5: #{tpu_custom_call.1} parent=1 // loop_body
      %s32 = ssub.s32 %s27, 1
      %s33 = ssub.s32 %s27, 2
      %s43 = sadd.s32 1, %s36
      %p44 = scmp.ge.s32.totalorder %s43, 1
      %s45 = scalar_select %p44, 0, %s43
      %s46 = sadd.s32 1, %s35
      %s47 = scalar_select %p44, %s46, %s35
      %p48 = scmp.ge.s32.totalorder %s47, 1
      %s49 = scalar_select %p48, 0, %s47
      %s50 = sadd.s32 1, %s34
      %s51 = scalar_select %p48, %s50, %s34
      %p52 = scmp.ge.s32.totalorder %s51, 2
      %s53 = scalar_select %p52, 0, %s51
      %s54 = sadd.s32 %s35, %s36
      %s55 = sadd.s32 %s49, %s45
      %s56 = ssub.s32 %s34, %s53
      %s57 = ssub.s32 %s54, %s55
      %s58 = sor.u32 %s56, %s57
      %p59 = scmp.eq.s32.totalorder %s58, 0
      %s61 = sadd.s32 %s60, 1
      %s62 = scalar_select %p59, %s60, %s61
      %p65 = pneg %p59
      %p66 = scmp.eq.s32.totalorder %s27, 1
      %p67 = por %p65, %p66
      %p68 = scmp.ne.s32.totalorder %s60, %s63
      %p69 = scmp.eq.s32.totalorder %s27, 0
      %p70 = por %p68, %p69
      %p71 = scmp.ne.s32.totalorder %s60, %s63
      %p72 = scmp.eq.s32.totalorder %s32, 1
      %p73 = por %p71, %p72
      %p74 = scmp.ne.s32.totalorder %s63, %s64
      %p75 = scmp.eq.s32.totalorder %s32, 0
      %p76 = por %p74, %p75
      %p77 = scmp.ne.s32.totalorder %s63, %s64
      %p78 = scmp.eq.s32.totalorder %s33, 1
      %p79 = por %p77, %p78
      %p81 = scmp.ne.s32.totalorder %s64, %s80
      %p82 = scmp.eq.s32.totalorder %s33, 0
      %p83 = por %p81, %p82
      %s84 = sadd.s32 %s35, %s36
      %s85 = sadd.s32 %s49, %s45
      %s86 = ssub.s32 %s34, %s53
      %s87 = ssub.s32 %s84, %s85
      %s88 = sor.u32 %s86, %s87
      %p89 = scmp.eq.s32.totalorder %s88, 0
      %s91 = sadd.s32 %s90, 1
      %s92 = scalar_select %p89, %s90, %s91
      %p95 = pneg %p89
      %p96 = scmp.eq.s32.totalorder %s27, 1
      %p97 = por %p95, %p96
      %p98 = scmp.ne.s32.totalorder %s90, %s93
      %p99 = scmp.eq.s32.totalorder %s27, 0
      %p100 = por %p98, %p99
      %p101 = scmp.ne.s32.totalorder %s90, %s93
      %p102 = scmp.eq.s32.totalorder %s32, 1
      %p103 = por %p101, %p102
      %p104 = scmp.ne.s32.totalorder %s93, %s94
      %p105 = scmp.eq.s32.totalorder %s32, 0
      %p106 = por %p104, %p105
      %p107 = scmp.ne.s32.totalorder %s93, %s94
      %p108 = scmp.eq.s32.totalorder %s33, 1
      %p109 = por %p107, %p108
      %p111 = scmp.ne.s32.totalorder %s94, %s110
      %p112 = scmp.eq.s32.totalorder %s33, 0
      %p113 = por %p111, %p112
      %s114 = sadd.s32 %s35, %s36
      %s115 = sadd.s32 %s49, %s45
      %s116 = ssub.s32 %s34, %s53
      %s117 = ssub.s32 %s114, %s115
      %s118 = sor.u32 %s116, %s117
      %p119 = scmp.eq.s32.totalorder %s118, 0
      %s121 = sadd.s32 %s120, 1
      %s122 = scalar_select %p119, %s120, %s121
      %p125 = pneg %p119
      %p126 = scmp.eq.s32.totalorder %s27, 1
      %p127 = por %p125, %p126
      %p128 = scmp.ne.s32.totalorder %s120, %s123
      %p129 = scmp.eq.s32.totalorder %s27, 0
      %p130 = por %p128, %p129
      %p131 = scmp.ne.s32.totalorder %s120, %s123
      %p132 = scmp.eq.s32.totalorder %s32, 1
      %p133 = por %p131, %p132
      %p134 = scmp.ne.s32.totalorder %s123, %s124
      %p135 = scmp.eq.s32.totalorder %s32, 0
      %p136 = por %p134, %p135
      %p137 = scmp.ne.s32.totalorder %s123, %s124
      %p138 = scmp.eq.s32.totalorder %s33, 1
      %p139 = por %p137, %p138
      %p141 = scmp.ne.s32.totalorder %s124, %s140
      %p142 = scmp.eq.s32.totalorder %s33, 0
      %p143 = por %p141, %p142
      %s144 = sadd.s32 %s35, %s36
      %s145 = sadd.s32 %s49, %s45
      %s146 = ssub.s32 %s34, %s53
      %s147 = ssub.s32 %s144, %s145
      %s148 = sor.u32 %s146, %s147
      %p149 = scmp.eq.s32.totalorder %s148, 0
      %s151 = sadd.s32 %s150, 1
      %s152 = scalar_select %p149, %s150, %s151
      %p155 = pneg %p149
      %p156 = scmp.eq.s32.totalorder %s27, 1
      %p157 = por %p155, %p156
      %p158 = scmp.ne.s32.totalorder %s150, %s153
      %p159 = scmp.eq.s32.totalorder %s27, 0
      %p160 = por %p158, %p159
      %p161 = scmp.ne.s32.totalorder %s150, %s153
      %p162 = scmp.eq.s32.totalorder %s32, 1
      %p163 = por %p161, %p162
      %p164 = scmp.ne.s32.totalorder %s153, %s154
      %p165 = scmp.eq.s32.totalorder %s32, 0
      %p166 = por %p164, %p165
      %p167 = scmp.ne.s32.totalorder %s153, %s154
      %p168 = scmp.eq.s32.totalorder %s33, 1
      %p169 = por %p167, %p168
      %p171 = scmp.ne.s32.totalorder %s154, %s170
      %p172 = scmp.eq.s32.totalorder %s33, 0
      %p173 = por %p171, %p172
      %s174 = sadd.s32 %s35, %s36
      %s175 = sadd.s32 %s49, %s45
      %s176 = ssub.s32 %s34, %s53
      %s177 = ssub.s32 %s174, %s175
      %s178 = sor.u32 %s176, %s177
      %p179 = scmp.eq.s32.totalorder %s178, 0
      %s181 = sadd.s32 %s180, 1
      %s182 = scalar_select %p179, %s180, %s181
      %p185 = pneg %p179
      %p186 = scmp.eq.s32.totalorder %s27, 1
      %p187 = por %p185, %p186
      %p188 = scmp.ne.s32.totalorder %s180, %s183
      %p189 = scmp.eq.s32.totalorder %s27, 0
      %p190 = por %p188, %p189
      %p191 = scmp.ne.s32.totalorder %s180, %s183
      %p192 = scmp.eq.s32.totalorder %s32, 1
      %p193 = por %p191, %p192
      %p194 = scmp.ne.s32.totalorder %s183, %s184
      %p195 = scmp.eq.s32.totalorder %s32, 0
      %p196 = por %p194, %p195
      %p197 = scmp.ne.s32.totalorder %s183, %s184
      %p198 = scmp.eq.s32.totalorder %s33, 1
      %p199 = por %p197, %p198
      %p201 = scmp.ne.s32.totalorder %s184, %s200
      %p202 = scmp.eq.s32.totalorder %s33, 0
      %p203 = por %p201, %p202
      %s204 = sadd.s32 %s35, %s36
      %s205 = sadd.s32 %s49, %s45
      %s206 = ssub.s32 %s34, %s53
      %s207 = ssub.s32 %s204, %s205
      %s208 = sor.u32 %s206, %s207
      %p209 = scmp.eq.s32.totalorder %s208, 0
      %s211 = sadd.s32 %s210, 1
      %s212 = scalar_select %p209, %s210, %s211
      %p215 = pneg %p209
      %p216 = scmp.eq.s32.totalorder %s27, 1
      %p217 = por %p215, %p216
      %p218 = scmp.ne.s32.totalorder %s210, %s213
      %p219 = scmp.eq.s32.totalorder %s27, 0
      %p220 = por %p218, %p219
      %p221 = scmp.ne.s32.totalorder %s210, %s213
      %p222 = scmp.eq.s32.totalorder %s32, 1
      %p223 = por %p221, %p222
      %p224 = scmp.ne.s32.totalorder %s213, %s214
      %p225 = scmp.eq.s32.totalorder %s32, 0
      %p226 = por %p224, %p225
      %p227 = scmp.ne.s32.totalorder %s213, %s214
      %p228 = scmp.eq.s32.totalorder %s33, 1
      %p229 = por %p227, %p228
      %p231 = scmp.ne.s32.totalorder %s214, %s230
      %p232 = scmp.eq.s32.totalorder %s33, 0
      %p233 = por %p231, %p232
      %s234 = ssub.s32 %s34, %s53
      %s235 = ssub.s32 %s35, %s49
      %s236 = sor.u32 %s234, %s235
      %p237 = scmp.eq.s32.totalorder %s236, 0
      %s239 = sadd.s32 %s238, 1
      %s240 = scalar_select %p237, %s238, %s239
      %p243 = pneg %p237
      %p244 = scmp.eq.s32.totalorder %s27, 1
      %p245 = por %p243, %p244
      %p246 = scmp.ne.s32.totalorder %s238, %s241
      %p247 = scmp.eq.s32.totalorder %s27, 0
      %p248 = por %p246, %p247
      %p249 = scmp.ne.s32.totalorder %s238, %s241
      %p250 = scmp.eq.s32.totalorder %s32, 1
      %p251 = por %p249, %p250
      %p252 = scmp.ne.s32.totalorder %s241, %s242
      %p253 = scmp.eq.s32.totalorder %s32, 0
      %p254 = por %p252, %p253
      %p255 = scmp.ne.s32.totalorder %s241, %s242
      %p256 = scmp.eq.s32.totalorder %s33, 1
      %p257 = por %p255, %p256
      %p259 = scmp.ne.s32.totalorder %s242, %s258
      %p260 = scmp.eq.s32.totalorder %s33, 0
      %p261 = por %p259, %p260
      %p262 = scmp.le.s32.totalorder 1, %s27
      %p263 = scmp.lt.s32.totalorder %s27, 3
      %p264 = pnand %p262, %p263
      %p265 = pneg %p264
      // Predicated region
      $region9: #{tpu_custom_call.1} parent=5 // pred_check
        _
      $region10: #{tpu_custom_call.1} parent=5 // pred_check_branch
        %267 = sbr.rel (%p264) target = $region12
      $region11: #{tpu_custom_call.1} parent=5 // pred_region
        %s268 = ssub.s32 %s27, 1
      $region12: #{tpu_custom_call.1} parent=5 // pred_fallthru
        _
      %p269 = scmp.lt.s32.totalorder %s27, 2
      // Predicated region
      $region13: #{tpu_custom_call.1} parent=5 // pred_check
        %p270 = pneg %p269
      $region14: #{tpu_custom_call.1} parent=5 // pred_check_branch
        %272 = sbr.rel (%p270) target = $region16
      $region15: #{tpu_custom_call.1} parent=5 // pred_region
        // Predicated region
        $region17: #{tpu_custom_call.1} parent=15 // pred_check
          %p273 = pneg %p70
        $region18: #{tpu_custom_call.1} parent=15 // pred_check_branch
          %275 = sbr.rel (%p273) target = $region20
        $region19: #{tpu_custom_call.1} parent=15 // pred_region
          %s276 = sand.u32 %s60, 1
          %s277 = scalar_lea.sflag [#allocation4], %s276
          %s278 = sand.u32 %s60, 1
          %s279 = smul.addr %s278, 8
          %s280 = scalar_lea.vmem [#allocation3], %s279
          %s281 = sadd.s32 %s35, %s36
          %s283 = ssub.s32 128, 128
          %284 = vsyncadd %s277, %s283
          %s285 = sadd.s32 %s281, %s34
          %s286 = smul.addr %s285, 128
          %s287 = scalar_lea.hbm %s0, %s286
          %s289 = sshll.u32 %s280, 4
          %s290 = int_to_ptr.vmem [resolvable:$true] %s289
          %292 = dma.hbm_to_vmem [thread:$0]  %s287, 128, %s290, %s277
        $region20: #{tpu_custom_call.1} parent=15 // pred_fallthru
          _
        // Predicated region
        $region21: #{tpu_custom_call.1} parent=15 // pred_check
          %p293 = pneg %p100
        $region22: #{tpu_custom_call.1} parent=15 // pred_check_branch
          %295 = sbr.rel (%p293) target = $region24
        $region23: #{tpu_custom_call.1} parent=15 // pred_region
          %s296 = sand.u32 %s27, 1
          %s297 = scalar_lea.sflag [#allocation7], %s296
          %s298 = sand.u32 %s90, 1
          %s299 = smul.addr %s298, 16
          %s300 = scalar_lea.vmem [#allocation6], %s299
          %s301 = sadd.s32 %s35, %s36
          %s303 = ssub.s32 256, 256
          %304 = vsyncadd %s297, %s303
          %s305 = smul.addr %s34, 2
          %s306 = sadd.s32 %s301, %s305
          %s307 = smul.addr %s306, 128
          %s308 = scalar_lea.hbm %s1, %s307
          %s309 = sshll.u32 %s300, 4
          %s310 = int_to_ptr.vmem [resolvable:$true] %s309
          %315 = dma.hbm_to_vmem [thread:$0]  %s308, 256, %s310, %s297, 128, 128, 8
        $region24: #{tpu_custom_call.1} parent=15 // pred_fallthru
          _
        // Predicated region
        $region25: #{tpu_custom_call.1} parent=15 // pred_check
          %p316 = pneg %p130
        $region26: #{tpu_custom_call.1} parent=15 // pred_check_branch
          %318 = sbr.rel (%p316) target = $region28
        $region27: #{tpu_custom_call.1} parent=15 // pred_region
          %s319 = sand.u32 %s27, 1
          %s320 = scalar_lea.sflag [#allocation7], %s319
          %s321 = sand.u32 %s120, 1
          %s322 = smul.addr %s321, 16
          %s323 = scalar_lea.vmem [#allocation8], %s322
          %s324 = sadd.s32 %s35, %s36
          %s326 = ssub.s32 256, 256
          %327 = vsyncadd %s320, %s326
          %s328 = smul.addr %s34, 2
          %s329 = sadd.s32 %s324, %s328
          %s330 = smul.addr %s329, 128
          %s331 = scalar_lea.hbm %s2, %s330
          %s332 = sshll.u32 %s323, 4
          %s333 = int_to_ptr.vmem [resolvable:$true] %s332
          %338 = dma.hbm_to_vmem [thread:$0]  %s331, 256, %s333, %s320, 128, 128, 8
        $region28: #{tpu_custom_call.1} parent=15 // pred_fallthru
          _
        // Predicated region
        $region29: #{tpu_custom_call.1} parent=15 // pred_check
          %p339 = pneg %p160
        $region30: #{tpu_custom_call.1} parent=15 // pred_check_branch
          %341 = sbr.rel (%p339) target = $region32
        $region31: #{tpu_custom_call.1} parent=15 // pred_region
          %s342 = sand.u32 %s27, 1
          %s343 = scalar_lea.sflag [#allocation10], %s342
          %s344 = sand.u32 %s150, 1
          %s345 = smul.addr %s344, 16
          %s346 = scalar_lea.vmem [#allocation9], %s345
          %s347 = sadd.s32 %s35, %s36
          %s349 = ssub.s32 256, 256
          %350 = vsyncadd %s343, %s349
          %s351 = smul.addr %s34, 2
          %s352 = sadd.s32 %s347, %s351
          %s353 = smul.addr %s352, 128
          %s354 = scalar_lea.hbm %s3, %s353
          %s355 = sshll.u32 %s346, 4
          %s356 = int_to_ptr.vmem [resolvable:$true] %s355
          %361 = dma.hbm_to_vmem [thread:$0]  %s354, 256, %s356, %s343, 128, 128, 8
        $region32: #{tpu_custom_call.1} parent=15 // pred_fallthru
          _
        // Predicated region
        $region33: #{tpu_custom_call.1} parent=15 // pred_check
          %p362 = pneg %p190
        $region34: #{tpu_custom_call.1} parent=15 // pred_check_branch
          %364 = sbr.rel (%p362) target = $region36
        $region35: #{tpu_custom_call.1} parent=15 // pred_region
          %s365 = sand.u32 %s27, 1
          %s366 = scalar_lea.sflag [#allocation10], %s365
          %s367 = sand.u32 %s180, 1
          %s368 = smul.addr %s367, 8
          %s369 = scalar_lea.vmem [#allocation11], %s368
          %s370 = sadd.s32 %s35, %s36
          %s372 = ssub.s32 128, 128
          %373 = vsyncadd %s366, %s372
          %s374 = sadd.s32 %s370, %s34
          %s375 = smul.addr %s374, 128
          %s376 = scalar_lea.hbm %s4, %s375
          %s378 = sshll.u32 %s369, 4
          %s379 = int_to_ptr.vmem [resolvable:$true] %s378
          %381 = dma.hbm_to_vmem [thread:$0]  %s376, 128, %s379, %s366
        $region36: #{tpu_custom_call.1} parent=15 // pred_fallthru
          _
        // Predicated region
        $region37: #{tpu_custom_call.1} parent=15 // pred_check
          %p382 = pneg %p220
        $region38: #{tpu_custom_call.1} parent=15 // pred_check_branch
          %384 = sbr.rel (%p382) target = $region40
        $region39: #{tpu_custom_call.1} parent=15 // pred_region
          %s385 = sand.u32 %s210, 1
          %s386 = scalar_lea.sflag [#allocation13], %s385
          %s387 = sand.u32 %s210, 1
          %s388 = smul.addr %s387, 32
          %s389 = scalar_lea.vmem [#allocation12], %s388
          %s390 = sadd.s32 %s35, %s36
          %s392 = ssub.s32 512, 512
          %393 = vsyncadd %s386, %s392
          %s394 = smul.addr %s34, 4
          %s395 = sadd.s32 %s390, %s394
          %s396 = smul.addr %s395, 128
          %s397 = scalar_lea.hbm %s5, %s396
          %s398 = sshll.u32 %s389, 4
          %s399 = int_to_ptr.vmem [resolvable:$true] %s398
          %404 = dma.hbm_to_vmem [thread:$0]  %s397, 512, %s399, %s386, 128, 128, 8
        $region40: #{tpu_custom_call.1} parent=15 // pred_fallthru
          _
      $region16: #{tpu_custom_call.1} parent=5 // pred_fallthru
        _
      %p405 = scmp.le.s32.totalorder 1, %s27
      %p406 = scmp.lt.s32.totalorder %s27, 3
      %p407 = pnand %p405, %p406
      %p408 = pneg %p407
      // Predicated region
      $region41: #{tpu_custom_call.1} parent=5 // pred_check
        _
      $region42: #{tpu_custom_call.1} parent=5 // pred_check_branch
        %410 = sbr.rel (%p407) target = $region44
      $region43: #{tpu_custom_call.1} parent=5 // pred_region
        %s411 = ssub.s32 %s27, 1
        %s412 = sand.u32 %s63, 1
        %s413 = scalar_lea.sflag [#allocation4], %s412
        %s414 = sand.u32 %s63, 1
        %s415 = smul.addr %s414, 8
        %s416 = scalar_lea.vmem [#allocation3], %s415
        // Predicated region
        $region45: #{tpu_custom_call.1} parent=43 // pred_check
          %p417 = pneg %p76
        $region46: #{tpu_custom_call.1} parent=43 // pred_check_branch
          %419 = sbr.rel (%p417) target = $region48
        $region47: #{tpu_custom_call.1} parent=43 // pred_region
          %420 = dma.done %s413, 128
        $region48: #{tpu_custom_call.1} parent=43 // pred_fallthru
          _
        %s421 = sand.u32 %s32, 1
        %s422 = scalar_lea.sflag [#allocation7], %s421
        %s423 = sand.u32 %s93, 1
        %s424 = smul.addr %s423, 16
        %s425 = scalar_lea.vmem [#allocation6], %s424
        // Predicated region
        $region49: #{tpu_custom_call.1} parent=43 // pred_check
          %p426 = pneg %p106
        $region50: #{tpu_custom_call.1} parent=43 // pred_check_branch
          %428 = sbr.rel (%p426) target = $region52
        $region51: #{tpu_custom_call.1} parent=43 // pred_region
          %429 = dma.done %s422, 256
        $region52: #{tpu_custom_call.1} parent=43 // pred_fallthru
          _
        %s430 = sand.u32 %s32, 1
        %s431 = scalar_lea.sflag [#allocation7], %s430
        %s432 = sand.u32 %s123, 1
        %s433 = smul.addr %s432, 16
        %s434 = scalar_lea.vmem [#allocation8], %s433
        // Predicated region
        $region53: #{tpu_custom_call.1} parent=43 // pred_check
          %p435 = pneg %p136
        $region54: #{tpu_custom_call.1} parent=43 // pred_check_branch
          %437 = sbr.rel (%p435) target = $region56
        $region55: #{tpu_custom_call.1} parent=43 // pred_region
          %438 = dma.done %s431, 256
        $region56: #{tpu_custom_call.1} parent=43 // pred_fallthru
          _
        %s439 = sand.u32 %s32, 1
        %s440 = scalar_lea.sflag [#allocation10], %s439
        %s441 = sand.u32 %s153, 1
        %s442 = smul.addr %s441, 16
        %s443 = scalar_lea.vmem [#allocation9], %s442
        // Predicated region
        $region57: #{tpu_custom_call.1} parent=43 // pred_check
          %p444 = pneg %p166
        $region58: #{tpu_custom_call.1} parent=43 // pred_check_branch
          %446 = sbr.rel (%p444) target = $region60
        $region59: #{tpu_custom_call.1} parent=43 // pred_region
          %447 = dma.done %s440, 256
        $region60: #{tpu_custom_call.1} parent=43 // pred_fallthru
          _
        %s448 = sand.u32 %s32, 1
        %s449 = scalar_lea.sflag [#allocation10], %s448
        %s450 = sand.u32 %s183, 1
        %s451 = smul.addr %s450, 8
        %s452 = scalar_lea.vmem [#allocation11], %s451
        // Predicated region
        $region61: #{tpu_custom_call.1} parent=43 // pred_check
          %p453 = pneg %p196
        $region62: #{tpu_custom_call.1} parent=43 // pred_check_branch
          %455 = sbr.rel (%p453) target = $region64
        $region63: #{tpu_custom_call.1} parent=43 // pred_region
          %456 = dma.done %s449, 128
        $region64: #{tpu_custom_call.1} parent=43 // pred_fallthru
          _
        %s457 = sand.u32 %s213, 1
        %s458 = scalar_lea.sflag [#allocation13], %s457
        %s459 = sand.u32 %s213, 1
        %s460 = smul.addr %s459, 32
        %s461 = scalar_lea.vmem [#allocation12], %s460
        // Predicated region
        $region65: #{tpu_custom_call.1} parent=43 // pred_check
          %p462 = pneg %p226
        $region66: #{tpu_custom_call.1} parent=43 // pred_check_branch
          %464 = sbr.rel (%p462) target = $region68
        $region67: #{tpu_custom_call.1} parent=43 // pred_region
          %465 = dma.done %s458, 512
        $region68: #{tpu_custom_call.1} parent=43 // pred_fallthru
          _
        %s466 = sand.u32 %s63, 1
        %s467 = scalar_lea.sflag [#allocation4], %s466
        %s468 = sand.u32 %s63, 1
        %s469 = smul.addr %s468, 8
        %s470 = scalar_lea.vmem [#allocation3], %s469
        %p471 = pneg %p76
        %p472 = pneg %p73
        %s473 = sand.u32 %s32, 1
        %s474 = scalar_lea.sflag [#allocation7], %s473
        %s475 = sand.u32 %s93, 1
        %s476 = smul.addr %s475, 16
        %s477 = scalar_lea.vmem [#allocation6], %s476
        %p478 = pneg %p106
        %p479 = pneg %p103
        %s480 = sand.u32 %s32, 1
        %s481 = scalar_lea.sflag [#allocation7], %s480
        %s482 = sand.u32 %s123, 1
        %s483 = smul.addr %s482, 16
        %s484 = scalar_lea.vmem [#allocation8], %s483
        %p485 = pneg %p136
        %p486 = pneg %p133
        %s487 = sand.u32 %s32, 1
        %s488 = scalar_lea.sflag [#allocation10], %s487
        %s489 = sand.u32 %s153, 1
        %s490 = smul.addr %s489, 16
        %s491 = scalar_lea.vmem [#allocation9], %s490
        %p492 = pneg %p166
        %p493 = pneg %p163
        %s494 = sand.u32 %s32, 1
        %s495 = scalar_lea.sflag [#allocation10], %s494
        %s496 = sand.u32 %s183, 1
        %s497 = smul.addr %s496, 8
        %s498 = scalar_lea.vmem [#allocation11], %s497
        %p499 = pneg %p196
        %p500 = pneg %p193
        %s501 = sand.u32 %s213, 1
        %s502 = scalar_lea.sflag [#allocation13], %s501
        %s503 = sand.u32 %s213, 1
        %s504 = smul.addr %s503, 32
        %s505 = scalar_lea.vmem [#allocation12], %s504
        %p506 = pneg %p226
        %p507 = pneg %p223
        %p508 = pneg %p254
        %p509 = pneg %p251
        %s510 = sand.u32 %s241, 1
        %s511 = scalar_lea.sflag [#allocation5], %s510
        %s512 = sand.u32 %s241, 1
        %s513 = smul.addr %s512, 16
        %s514 = scalar_lea.vmem [#allocation14], %s513
        %s515 = sadd.s32 %s38, %s39
        %s516 = sadd.s32 %s38, %s39
        %s517 = sadd.s32 %s38, %s39
        %s518 = sadd.s32 %s38, %s39
        %s519 = sadd.s32 %s38, %s39
        %s520 = sadd.s32 %s38, %s39
        %p521 = scmp.eq.s32.totalorder %s39, 0
        // Predicated region
        $region69: #{tpu_custom_call.1} parent=43 // pred_check
          %p522 = pneg %p521
        $region70: #{tpu_custom_call.1} parent=43 // pred_check_branch
          %524 = sbr.rel (%p522) target = $region72
        $region71: #{tpu_custom_call.1} parent=43 // pred_region
          %525 = vst [vmem:[#allocation2] sm:$0xff] 0.0
          %526 = vst [vmem:[#allocation2 + $0x8] sm:$0xff] 0.0
        $region72: #{tpu_custom_call.1} parent=43 // pred_fallthru
          _
        %v527 = vld [vmem:[%s416] sm:$0xff]
        %v528 = vld [vmem:[%s425] sm:$0xff]
        %v529 = vld [vmem:[%s425 + $0x8] sm:$0xff]
        %v530 = vld [vmem:[%s434] sm:$0xff]
        %v531 = vld [vmem:[%s434 + $0x8] sm:$0xff]
        %v532 = vld [vmem:[%s443] sm:$0xff]
        %v533 = vld [vmem:[%s443 + $0x8] sm:$0xff]
        %v534 = vld [vmem:[%s452] sm:$0xff]
        %v535 = vld [vmem:[%s461] sm:$0xff]
        %v536 = vld [vmem:[%s461 + $0x8] sm:$0xff]
        %v537 = vld [vmem:[%s461 + $0x10] sm:$0xff]
        %v538 = vld [vmem:[%s461 + $0x18] sm:$0xff]
        %v539 = vadd.f32 %v528, %v529
        %vm540 = vcmp.ne.f32.partialorder %v539, 0.0
        %v541 = vsel %vm540, 1, 0
        %v542 = vcvt.s32.f32 %v541
        %vm543 = vcmp.eq.f32.partialorder %v539, 2.0
        %v544 = vsel %vm543, 1, 0
        %v545 = vcvt.s32.f32 %v544
        %v546 = vsub.f32 %v534, %v527
        %v547 = vmul.f32 %v546, %v542
        %v548 = vmul.f32 %v547, %v547
        %v549 = vadd.f32 %v548, 0.0
        %v550 = vrot.slane %v549, 4
        %v551 = vadd.f32 %v549, %v550
        %v552 = vrot.slane %v551, 2
        %v553 = vadd.f32 %v551, %v552
        %v554 = vrot.slane %v553, 1
        %v555 = vadd.f32 %v553, %v554
        %v556 = vsub.f32 %v532, %v530
        %v557 = vsub.f32 %v533, %v531
        %v558 = vmul.f32 %v556, %v556
        %v559 = vmul.f32 %v557, %v557
        %v560 = vadd.f32 %v558, %v559
        %v561 = vrot.slane %v560, 4
        %v562 = vadd.f32 %v560, %v561
        %v563 = vrot.slane %v562, 2
        %v564 = vadd.f32 %v562, %v563
        %v565 = vrot.slane %v564, 1
        %v566 = vadd.f32 %v564, %v565
        %v567 = vlog2.pop %v535
        %v568 = vmul.f32 %v567, 0.6931472
        %v569 = vlog2.pop %v536
        %v570 = vmul.f32 %v569, 0.6931472
        %v571 = vlog2.pop %v537
        %v572 = vmul.f32 %v571, 0.6931472
        %v573 = vlog2.pop %v538
        %v574 = vmul.f32 %v573, 0.6931472
        %v575 = vmax.f32 %v568, -100.0
        %v576 = vmax.f32 %v570, -100.0
        %v577 = vmax.f32 %v572, -100.0
        %v578 = vmax.f32 %v574, -100.0
        %v579 = vsub.f32 1.0, %v535
        %v580 = vsub.f32 1.0, %v536
        %v581 = vsub.f32 1.0, %v537
        %v582 = vsub.f32 1.0, %v538
        %v583 = vlog2.pop %v579
        %v584 = vmul.f32 %v583, 0.6931472
        %v585 = vlog2.pop %v580
        %v586 = vmul.f32 %v585, 0.6931472
        %v587 = vlog2.pop %v581
        %v588 = vmul.f32 %v587, 0.6931472
        %v589 = vlog2.pop %v582
        %v590 = vmul.f32 %v589, 0.6931472
        %v591 = vmax.f32 %v584, -100.0
        %v592 = vmax.f32 %v586, -100.0
        %v593 = vmax.f32 %v588, -100.0
        %v594 = vmax.f32 %v590, -100.0
        %v595 = vsub.f32 %v575, %v591
        %v596 = vsub.f32 %v576, %v592
        %v597 = vsub.f32 %v577, %v593
        %v598 = vsub.f32 %v578, %v594
        %v599 = vadd.f32 %v595, %v597
        %v600 = vadd.f32 %v596, %v598
        %v601 = vmul.f32 %v528, %v599
        %v602 = vmul.f32 %v529, %v600
        %v603 = vadd.f32 %v601, %v602
        %v604 = vrot.slane %v603, 4
        %v605 = vadd.f32 %v603, %v604
        %v606 = vrot.slane %v605, 2
        %v607 = vadd.f32 %v605, %v606
        %v608 = vrot.slane %v607, 1
        %v609 = vadd.f32 %v607, %v608
        %v610 = vadd.f32 %v591, %v592
        %v611 = vadd.f32 %v610, %v593
        %v612 = vadd.f32 %v611, %v594
        %v613 = vrot.slane %v612, 4
        %v614 = vadd.f32 %v612, %v613
        %v615 = vrot.slane %v614, 2
        %v616 = vadd.f32 %v614, %v615
        %v617 = vrot.slane %v616, 1
        %v618 = vadd.f32 %v616, %v617
        %v619 = vadd.f32 %v609, %v618
        %v620 = vsub.f32 0.0, %v619
        %v621 = vadd.f32 %v575, %v576
        %v622 = vadd.f32 %v621, %v577
        %v623 = vadd.f32 %v622, %v578
        %v624 = vmul.f32 %v545, %v623
        %v625 = vadd.f32 %v624, 0.0
        %v626 = vrot.slane %v625, 4
        %v627 = vadd.f32 %v625, %v626
        %v628 = vrot.slane %v627, 2
        %v629 = vadd.f32 %v627, %v628
        %v630 = vrot.slane %v629, 1
        %v631 = vadd.f32 %v629, %v630
        %v632 = vsub.f32 0.0, %v631
        %v633 = vxor.u32 %v535, 2147483648
        %v634 = vxor.u32 %v536, 2147483648
        %v635 = vxor.u32 %v537, 2147483648
        %v636 = vxor.u32 %v538, 2147483648
        %v637 = vmul.f32 %v633, 1.442695
        %v638 = vpow.pop %v637
        %v639 = vmul.f32 %v634, 1.442695
        %v640 = vpow.pop %v639
        %v641 = vmul.f32 %v635, 1.442695
        %v642 = vpow.pop %v641
        %v643 = vmul.f32 %v636, 1.442695
        %v644 = vpow.pop %v643
        %v645 = vadd.f32 %v638, 1.0
        %v646 = vadd.f32 %v640, 1.0
        %v647 = vadd.f32 %v642, 1.0
        %v648 = vadd.f32 %v644, 1.0
        %v649 = vrcp.pop %v645
        %v650 = vmul.f32 1.0, %v649
        %v651 = vrcp.pop %v646
        %v652 = vmul.f32 1.0, %v651
        %v653 = vrcp.pop %v647
        %v654 = vmul.f32 1.0, %v653
        %v655 = vrcp.pop %v648
        %v656 = vmul.f32 1.0, %v655
        %v657 = vadd.f32 %v650, %v654
        %v658 = vadd.f32 %v652, %v656
        %v659 = vadd.f32 %v657, %v658
        %v660 = vmul.f32 %v528, %v657
        %v661 = vmul.f32 %v529, %v658
        %v662 = vadd.f32 %v660, %v661
        %v663 = vrot.slane %v662, 4
        %v664 = vadd.f32 %v662, %v663
        %v665 = vrot.slane %v664, 2
        %v666 = vadd.f32 %v664, %v665
        %v667 = vrot.slane %v666, 1
        %v668 = vadd.f32 %v666, %v667
        %v669 = vadd.f32 %v659, 0.0
        %v670 = vrot.slane %v669, 4
        %v671 = vadd.f32 %v669, %v670
        %v672 = vrot.slane %v671, 2
        %v673 = vadd.f32 %v671, %v672
        %v674 = vrot.slane %v673, 1
        %v675 = vadd.f32 %v673, %v674
        %v676 = vadd.f32 %v539, 0.0
        %v677 = vrot.slane %v676, 4
        %v678 = vadd.f32 %v676, %v677
        %v679 = vrot.slane %v678, 2
        %v680 = vadd.f32 %v678, %v679
        %v681 = vrot.slane %v680, 1
        %v682 = vadd.f32 %v680, %v681
        %v683 = vmul.f32 %v545, %v659
        %v684 = vadd.f32 %v683, 0.0
        %v685 = vrot.slane %v684, 4
        %v686 = vadd.f32 %v684, %v685
        %v687 = vrot.slane %v686, 2
        %v688 = vadd.f32 %v686, %v687
        %v689 = vrot.slane %v688, 1
        %v690 = vadd.f32 %v688, %v689
        %v691 = vadd.f32 %v545, 0.0
        %v692 = vrot.slane %v691, 4
        %v693 = vadd.f32 %v691, %v692
        %v694 = vrot.slane %v693, 2
        %v695 = vadd.f32 %v693, %v694
        %v696 = vrot.slane %v695, 1
        %v697 = vadd.f32 %v695, %v696
        %vm698 = vcmask 1040384
        %v699 = vsel %vm698, %v555, %v566
        %vm700 = vcmask 1041408
        %v701 = vsel %vm700, %v699, %v620
        %vm702 = vcmask 1042432
        %v703 = vsel %vm702, %v701, %v632
        %vm704 = vcmask 1043456
        %v705 = vsel %vm704, %v703, %v668
        %vm706 = vcmask 1044480
        %v707 = vsel %vm706, %v705, %v675
        %vm708 = vcmask 1045504
        %v709 = vsel %vm708, %v707, %v682
        %vm710 = vcmask 1046528
        %v711 = vsel %vm710, %v709, %v690
        %v712 = vsel %vm698, %v697, 0.0
        %v713 = vld [vmem:[#allocation2] sm:$0xff]
        %v714 = vld [vmem:[#allocation2 + $0x8] sm:$0xff]
        %v715 = vadd.f32 %v713, %v711
        %v716 = vadd.f32 %v714, %v712
        %717 = vst [vmem:[#allocation2] sm:$0xff] %v715
        %718 = vst [vmem:[#allocation2 + $0x8] sm:$0xff] %v716
        // Predicated region
        $region73: #{tpu_custom_call.1} parent=43 // pred_check
          %p719 = pneg %p521
        $region74: #{tpu_custom_call.1} parent=43 // pred_check_branch
          %721 = sbr.rel (%p719) target = $region76
        $region75: #{tpu_custom_call.1} parent=43 // pred_region
          %v722 = vld [vmem:[#allocation2] sm:$0xff]
          %v723 = vld [vmem:[#allocation2 + $0x8] sm:$0xff]
          %724 = vst [vmem:[%s514] sm:$0xff] %v722
          %725 = vst [vmem:[%s514 + $0x8] sm:$0xff] %v723
        $region76: #{tpu_custom_call.1} parent=43 // pred_fallthru
          _
        %s726 = sand.u32 %s241, 1
        %s727 = scalar_lea.sflag [#allocation5], %s726
        %s728 = sand.u32 %s241, 1
        %s729 = smul.addr %s728, 16
        %s730 = scalar_lea.vmem [#allocation14], %s729
        // Predicated region
        $region77: #{tpu_custom_call.1} parent=43 // pred_check
          %p731 = pneg %p251
        $region78: #{tpu_custom_call.1} parent=43 // pred_check_branch
          %733 = sbr.rel (%p731) target = $region80
        $region79: #{tpu_custom_call.1} parent=43 // pred_region
          %s735 = ssub.s32 256, 256
          %736 = vsyncadd %s727, %s735
          %s737 = smul.addr %s38, 2
          %s738 = smul.addr %s37, 2
          %s739 = sadd.s32 %s737, %s738
          %s740 = smul.addr %s739, 128
          %s741 = scalar_lea.hbm %s6, %s740
          %s742 = sshll.u32 %s730, 4
          %s743 = int_to_ptr.vmem [resolvable:$true] %s742
          %748 = dma.vmem_to_hbm [thread:$0]  %s743, 256, %s741, %s727, 128, 128, 8
        $region80: #{tpu_custom_call.1} parent=43 // pred_fallthru
          _
      $region44: #{tpu_custom_call.1} parent=5 // pred_fallthru
        _
      %p749 = scmp.le.s32.totalorder 2, %s27
      // Predicated region
      $region81: #{tpu_custom_call.1} parent=5 // pred_check
        %p750 = pneg %p749
      $region82: #{tpu_custom_call.1} parent=5 // pred_check_branch
        %752 = sbr.rel (%p750) target = $region84
      $region83: #{tpu_custom_call.1} parent=5 // pred_region
        %s753 = ssub.s32 %s27, 2
        // Predicated region
        $region85: #{tpu_custom_call.1} parent=83 // pred_check
          %p754 = pneg %p257
        $region86: #{tpu_custom_call.1} parent=83 // pred_check_branch
          %756 = sbr.rel (%p754) target = $region88
        $region87: #{tpu_custom_call.1} parent=83 // pred_region
          %s757 = sand.u32 %s242, 1
          %s758 = scalar_lea.sflag [#allocation5], %s757
          %s759 = sand.u32 %s242, 1
          %s760 = smul.addr %s759, 16
          %s761 = scalar_lea.vmem [#allocation14], %s760
          %762 = dma.done %s758, 256
        $region88: #{tpu_custom_call.1} parent=83 // pred_fallthru
          _
      $region84: #{tpu_custom_call.1} parent=5 // pred_fallthru
        _
    $region6: #{tpu_custom_call.1} parent=1 // loop_footer
      %s31 = sadd.s32 1, %s27
    $region7: #{tpu_custom_call.1} parent=1 // loop_footer_branch
      %26 = sbr.rel target = $region3
    $region8: #{tpu_custom_call.1} parent=1 // loop_exit
      _
    %763 = vsyncpa [#allocation4], 1
    %s764 = scalar_lea.sflag [#allocation4], 1
    %765 = vsyncpa %s764, 1
    %766 = vsyncpa [#allocation7], 1
    %s767 = scalar_lea.sflag [#allocation7], 1
    %768 = vsyncpa %s767, 1
    %769 = vsyncpa [#allocation10], 1
    %s770 = scalar_lea.sflag [#allocation10], 1
    %771 = vsyncpa %s770, 1
    %772 = vsyncpa [#allocation13], 1
    %s773 = scalar_lea.sflag [#allocation13], 1
    %774 = vsyncpa %s773, 1
    %775 = vsyncpa [#allocation5], 1
    %s776 = scalar_lea.sflag [#allocation5], 1
    %777 = vsyncpa %s776, 1

</llo_original>
